<compile_context>
chip_gen: v5e
topology: v5e:2x2
jax: 0.10.0
libtpu: 0.0.40
codegen_flags: <defaults>
</compile_context>

<pallas_src>
import jax
import jax.numpy as jnp
from jax.experimental import pallas as pl
from jax.experimental.pallas import tpu as pltpu

D_IN, H1, H2, D_OUT = 4, 8, 4, 2


def mlp_kernel(x_ref, w1_ref, b1_ref, w2_ref, b2_ref, w3_ref, b3_ref, o_ref):
    # x_ref: VMEM (D_IN, TILE_B), batch on lanes.
    # w*_ref: SMEM (out, in)  (PyTorch layout), b*_ref: SMEM (out,).
    x = x_ref[...]
    rows = [x[k:k + 1, :] for k in range(D_IN)]          # D_IN x (1, TILE_B)

    def dense_vpu(rows_in, w_ref, b_ref, n_out, relu):
        # y[j, :] = b[j] + sum_k w[j, k] * x[k, :]   — pure VPU MACs,
        # weights read as SMEM scalars and broadcast along lanes.
        n_in = len(rows_in)
        out_rows = []
        for j in range(n_out):
            acc = rows_in[0] * w_ref[j, 0]
            for k in range(1, n_in):
                acc = acc + rows_in[k] * w_ref[j, k]
            acc = acc + b_ref[j]
            if relu:
                acc = jnp.maximum(acc, 0.0)
            out_rows.append(acc)
        return out_rows

    h1 = dense_vpu(rows, w1_ref, b1_ref, H1, relu=True)   # 8 x (1, TILE_B)
    h2 = dense_vpu(h1, w2_ref, b2_ref, H2, relu=True)     # 4 x (1, TILE_B)

    # Dropout(p=0.5): identity in eval mode (PyTorch inference semantics).
    # TODO(synk): training-mode stochastic dropout would use pltpu.prng_seed /
    # pltpu.prng_random_bits; omitted to keep deterministic eval semantics.

    z0, z1 = dense_vpu(h2, w3_ref, b3_ref, D_OUT, relu=False)

    # 2-class softmax along the class axis (two explicit rows -> VPU/EUP only,
    # no XLU reduction). Stable (max-subtracted), reciprocal on the EUP slot.
    m = jnp.maximum(z0, z1)
    e0 = jnp.exp(z0 - m)
    e1 = jnp.exp(z1 - m)
    inv = pl.reciprocal(e0 + e1, approx=True)
    o_ref[...] = jnp.concatenate([e0 * inv, e1 * inv], axis=0)   # (2, TILE_B)


def _round_up(n, m):
    return ((n + m - 1) // m) * m


def mlp_forward(x, params, tile_b=None):
    """x: (B, ...) whose trailing dims flatten to 4 features. Returns (B, 2) f32."""
    B = x.shape[0]
    xf = x.reshape(B, -1).astype(jnp.float32)             # (B, 4)

    if tile_b is None:
        # Lane-dense tile (multiple of 128). 64K rows keeps the working set
        # (x/out tiles double-buffered + f32 intermediates, a few MiB total)
        # comfortably inside VMEM on v5e/v6e (128 MiB) and v7x (64 MiB).
        tile_b = min(_round_up(B, 128), 64 * 1024)

    n_tiles = -(-B // tile_b)                              # cdiv
    b_pad = n_tiles * tile_b
    if b_pad != B:
        xf = jnp.pad(xf, ((0, b_pad - B), (0, 0)))         # zero-pad ragged tile
    xt = xf.T                                              # (4, b_pad): layout plumbing in wrapper

    w1, b1, w2, b2, w3, b3 = params
    smem = pl.BlockSpec(memory_space=pltpu.MemorySpace.SMEM)

    out_t = pl.pallas_call(
        mlp_kernel,
        out_shape=jax.ShapeDtypeStruct((D_OUT, b_pad), jnp.float32),
        grid=(n_tiles,),
        in_specs=[
            pl.BlockSpec((D_IN, tile_b), lambda i: (0, i)),   # streamed batch tiles
            smem, smem, smem, smem, smem, smem,               # resident tiny params
        ],
        out_specs=pl.BlockSpec((D_OUT, tile_b), lambda i: (0, i)),
        compiler_params=pltpu.CompilerParams(
            dimension_semantics=("parallel",),                # megacore sharding on v7x
            vmem_limit_bytes=32 * 1024 * 1024,
        ),
    )(xt, w1, b1, w2, b2, w3, b3)

    return out_t[:, :B].T                                   # (B, 2)


def init_params(key):
    """nn.Linear-style init U(-1/sqrt(fan_in), 1/sqrt(fan_in)).
    Weights stored PyTorch-style as (out, in); biases as (out,)."""
    def linear(k, fan_in, fan_out):
        kw, kb = jax.random.split(k)
        bound = 1.0 / jnp.sqrt(fan_in)
        w = jax.random.uniform(kw, (fan_out, fan_in), jnp.float32, -bound, bound)
        b = jax.random.uniform(kb, (fan_out,), jnp.float32, -bound, bound)
        return w, b

    k1, k2, k3 = jax.random.split(key, 3)
    w1, b1 = linear(k1, D_IN, H1)
    w2, b2 = linear(k2, H1, H2)
    w3, b3 = linear(k3, H2, D_OUT)
    return (w1, b1, w2, b2, w3, b3)


def reference_forward(x, params):
    """Pure-JAX reference (eval-mode dropout = identity)."""
    B = x.shape[0]
    xf = x.reshape(B, -1).astype(jnp.float32)
    w1, b1, w2, b2, w3, b3 = params
    h1 = jnp.maximum(xf @ w1.T + b1, 0.0)
    h2 = jnp.maximum(h1 @ w2.T + b2, 0.0)
    logits = h2 @ w3.T + b3
    return jax.nn.softmax(logits, axis=1)


if __name__ == "__main__":
    key = jax.random.PRNGKey(0)
    k_params, k_x = jax.random.split(key)

    params = init_params(k_params)
    # Small input whose flatten gives 4 features per example: (B=8, 2, 2).
    x = jax.random.normal(k_x, (8, 2, 2), jnp.float32)

    out = mlp_forward(x, params)
    out = jax.block_until_ready(out)

    ref = reference_forward(x, params)
    assert out.shape == (8, 2), out.shape
    # Tolerance allows for pl.reciprocal(approx=True) (~2^-12 relative error).
    assert jnp.allclose(out, ref, atol=2e-3, rtol=2e-3), "mismatch vs reference"
    assert jnp.allclose(jnp.sum(out, axis=1), 1.0, atol=2e-3), "softmax rows must sum to ~1"

    print("KERNEL_OK")
</pallas_src>

<mosaic_0001>
module attributes {stable_mosaic.version = 11 : i64} {
  func.func @mlp_kernel(%arg0: i32, %arg1: memref<4x128xf32, #tpu.memory_space<vmem>>, %arg2: memref<8x4xf32, #tpu.memory_space<smem>>, %arg3: memref<8xf32, #tpu.memory_space<smem>>, %arg4: memref<4x8xf32, #tpu.memory_space<smem>>, %arg5: memref<4xf32, #tpu.memory_space<smem>>, %arg6: memref<2x4xf32, #tpu.memory_space<smem>>, %arg7: memref<2xf32, #tpu.memory_space<smem>>, %arg8: memref<2x128xf32, #tpu.memory_space<vmem>>) attributes {dimension_semantics = [#tpu.dimension_semantics<parallel>], iteration_bounds = array<i64: 1>, scalar_prefetch = 0 : i64, scratch_operands = 0 : i64, tpu.core_type = #tpu.core_type<tc>, window_params = [{transform_indices = @transform_0, window_bounds = array<i64: 4, 128>}, {transform_indices = @transform_1, window_bounds = array<i64: 8, 4>}, {transform_indices = @transform_2, window_bounds = array<i64: 8>}, {transform_indices = @transform_3, window_bounds = array<i64: 4, 8>}, {transform_indices = @transform_4, window_bounds = array<i64: 4>}, {transform_indices = @transform_5, window_bounds = array<i64: 2, 4>}, {transform_indices = @transform_6, window_bounds = array<i64: 2>}, {transform_indices = @transform_7, window_bounds = array<i64: 2, 128>}]} {
    %c0 = arith.constant 0 : index
    %c0_0 = arith.constant 0 : index
    %0 = vector.load %arg1[%c0, %c0_0] : memref<4x128xf32, #tpu.memory_space<vmem>>, vector<4x128xf32>
    %1 = vector.extract_strided_slice %0 {offsets = [0, 0], sizes = [1, 128], strides = [1, 1]} : vector<4x128xf32> to vector<1x128xf32>
    %2 = vector.extract_strided_slice %0 {offsets = [1, 0], sizes = [1, 128], strides = [1, 1]} : vector<4x128xf32> to vector<1x128xf32>
    %3 = vector.extract_strided_slice %0 {offsets = [2, 0], sizes = [1, 128], strides = [1, 1]} : vector<4x128xf32> to vector<1x128xf32>
    %4 = vector.extract_strided_slice %0 {offsets = [3, 0], sizes = [1, 128], strides = [1, 1]} : vector<4x128xf32> to vector<1x128xf32>
    %c0_1 = arith.constant 0 : index
    %c0_2 = arith.constant 0 : index
    %5 = memref.load %arg2[%c0_1, %c0_2] : memref<8x4xf32, #tpu.memory_space<smem>>
    %6 = vector.broadcast %5 : f32 to vector<1x128xf32>
    %7 = arith.mulf %1, %6 : vector<1x128xf32>
    %c0_3 = arith.constant 0 : index
    %c1 = arith.constant 1 : index
    %8 = memref.load %arg2[%c0_3, %c1] : memref<8x4xf32, #tpu.memory_space<smem>>
    %9 = vector.broadcast %8 : f32 to vector<1x128xf32>
    %10 = arith.mulf %2, %9 : vector<1x128xf32>
    %11 = arith.addf %7, %10 : vector<1x128xf32>
    %c0_4 = arith.constant 0 : index
    %c2 = arith.constant 2 : index
    %12 = memref.load %arg2[%c0_4, %c2] : memref<8x4xf32, #tpu.memory_space<smem>>
    %13 = vector.broadcast %12 : f32 to vector<1x128xf32>
    %14 = arith.mulf %3, %13 : vector<1x128xf32>
    %15 = arith.addf %11, %14 : vector<1x128xf32>
    %c0_5 = arith.constant 0 : index
    %c3 = arith.constant 3 : index
    %16 = memref.load %arg2[%c0_5, %c3] : memref<8x4xf32, #tpu.memory_space<smem>>
    %17 = vector.broadcast %16 : f32 to vector<1x128xf32>
    %18 = arith.mulf %4, %17 : vector<1x128xf32>
    %19 = arith.addf %15, %18 : vector<1x128xf32>
    %c0_6 = arith.constant 0 : index
    %20 = memref.load %arg3[%c0_6] : memref<8xf32, #tpu.memory_space<smem>>
    %21 = vector.broadcast %20 : f32 to vector<1x128xf32>
    %22 = arith.addf %19, %21 : vector<1x128xf32>
    %cst = arith.constant 0.000000e+00 : f32
    %23 = vector.broadcast %cst : f32 to vector<1x128xf32>
    %24 = arith.maximumf %22, %23 : vector<1x128xf32>
    %c1_7 = arith.constant 1 : index
    %c0_8 = arith.constant 0 : index
    %25 = memref.load %arg2[%c1_7, %c0_8] : memref<8x4xf32, #tpu.memory_space<smem>>
    %26 = vector.broadcast %25 : f32 to vector<1x128xf32>
    %27 = arith.mulf %1, %26 : vector<1x128xf32>
    %c1_9 = arith.constant 1 : index
    %c1_10 = arith.constant 1 : index
    %28 = memref.load %arg2[%c1_9, %c1_10] : memref<8x4xf32, #tpu.memory_space<smem>>
    %29 = vector.broadcast %28 : f32 to vector<1x128xf32>
    %30 = arith.mulf %2, %29 : vector<1x128xf32>
    %31 = arith.addf %27, %30 : vector<1x128xf32>
    %c1_11 = arith.constant 1 : index
    %c2_12 = arith.constant 2 : index
    %32 = memref.load %arg2[%c1_11, %c2_12] : memref<8x4xf32, #tpu.memory_space<smem>>
    %33 = vector.broadcast %32 : f32 to vector<1x128xf32>
    %34 = arith.mulf %3, %33 : vector<1x128xf32>
    %35 = arith.addf %31, %34 : vector<1x128xf32>
    %c1_13 = arith.constant 1 : index
    %c3_14 = arith.constant 3 : index
    %36 = memref.load %arg2[%c1_13, %c3_14] : memref<8x4xf32, #tpu.memory_space<smem>>
    %37 = vector.broadcast %36 : f32 to vector<1x128xf32>
    %38 = arith.mulf %4, %37 : vector<1x128xf32>
    %39 = arith.addf %35, %38 : vector<1x128xf32>
    %c1_15 = arith.constant 1 : index
    %40 = memref.load %arg3[%c1_15] : memref<8xf32, #tpu.memory_space<smem>>
    %41 = vector.broadcast %40 : f32 to vector<1x128xf32>
    %42 = arith.addf %39, %41 : vector<1x128xf32>
    %cst_16 = arith.constant 0.000000e+00 : f32
    %43 = vector.broadcast %cst_16 : f32 to vector<1x128xf32>
    %44 = arith.maximumf %42, %43 : vector<1x128xf32>
    %c2_17 = arith.constant 2 : index
    %c0_18 = arith.constant 0 : index
    %45 = memref.load %arg2[%c2_17, %c0_18] : memref<8x4xf32, #tpu.memory_space<smem>>
    %46 = vector.broadcast %45 : f32 to vector<1x128xf32>
    %47 = arith.mulf %1, %46 : vector<1x128xf32>
    %c2_19 = arith.constant 2 : index
    %c1_20 = arith.constant 1 : index
    %48 = memref.load %arg2[%c2_19, %c1_20] : memref<8x4xf32, #tpu.memory_space<smem>>
    %49 = vector.broadcast %48 : f32 to vector<1x128xf32>
    %50 = arith.mulf %2, %49 : vector<1x128xf32>
    %51 = arith.addf %47, %50 : vector<1x128xf32>
    %c2_21 = arith.constant 2 : index
    %c2_22 = arith.constant 2 : index
    %52 = memref.load %arg2[%c2_21, %c2_22] : memref<8x4xf32, #tpu.memory_space<smem>>
    %53 = vector.broadcast %52 : f32 to vector<1x128xf32>
    %54 = arith.mulf %3, %53 : vector<1x128xf32>
    %55 = arith.addf %51, %54 : vector<1x128xf32>
    %c2_23 = arith.constant 2 : index
    %c3_24 = arith.constant 3 : index
    %56 = memref.load %arg2[%c2_23, %c3_24] : memref<8x4xf32, #tpu.memory_space<smem>>
    %57 = vector.broadcast %56 : f32 to vector<1x128xf32>
    %58 = arith.mulf %4, %57 : vector<1x128xf32>
    %59 = arith.addf %55, %58 : vector<1x128xf32>
    %c2_25 = arith.constant 2 : index
    %60 = memref.load %arg3[%c2_25] : memref<8xf32, #tpu.memory_space<smem>>
    %61 = vector.broadcast %60 : f32 to vector<1x128xf32>
    %62 = arith.addf %59, %61 : vector<1x128xf32>
    %cst_26 = arith.constant 0.000000e+00 : f32
    %63 = vector.broadcast %cst_26 : f32 to vector<1x128xf32>
    %64 = arith.maximumf %62, %63 : vector<1x128xf32>
    %c3_27 = arith.constant 3 : index
    %c0_28 = arith.constant 0 : index
    %65 = memref.load %arg2[%c3_27, %c0_28] : memref<8x4xf32, #tpu.memory_space<smem>>
    %66 = vector.broadcast %65 : f32 to vector<1x128xf32>
    %67 = arith.mulf %1, %66 : vector<1x128xf32>
    %c3_29 = arith.constant 3 : index
    %c1_30 = arith.constant 1 : index
    %68 = memref.load %arg2[%c3_29, %c1_30] : memref<8x4xf32, #tpu.memory_space<smem>>
    %69 = vector.broadcast %68 : f32 to vector<1x128xf32>
    %70 = arith.mulf %2, %69 : vector<1x128xf32>
    %71 = arith.addf %67, %70 : vector<1x128xf32>
    %c3_31 = arith.constant 3 : index
    %c2_32 = arith.constant 2 : index
    %72 = memref.load %arg2[%c3_31, %c2_32] : memref<8x4xf32, #tpu.memory_space<smem>>
    %73 = vector.broadcast %72 : f32 to vector<1x128xf32>
    %74 = arith.mulf %3, %73 : vector<1x128xf32>
    %75 = arith.addf %71, %74 : vector<1x128xf32>
    %c3_33 = arith.constant 3 : index
    %c3_34 = arith.constant 3 : index
    %76 = memref.load %arg2[%c3_33, %c3_34] : memref<8x4xf32, #tpu.memory_space<smem>>
    %77 = vector.broadcast %76 : f32 to vector<1x128xf32>
    %78 = arith.mulf %4, %77 : vector<1x128xf32>
    %79 = arith.addf %75, %78 : vector<1x128xf32>
    %c3_35 = arith.constant 3 : index
    %80 = memref.load %arg3[%c3_35] : memref<8xf32, #tpu.memory_space<smem>>
    %81 = vector.broadcast %80 : f32 to vector<1x128xf32>
    %82 = arith.addf %79, %81 : vector<1x128xf32>
    %cst_36 = arith.constant 0.000000e+00 : f32
    %83 = vector.broadcast %cst_36 : f32 to vector<1x128xf32>
    %84 = arith.maximumf %82, %83 : vector<1x128xf32>
    %c4 = arith.constant 4 : index
    %c0_37 = arith.constant 0 : index
    %85 = memref.load %arg2[%c4, %c0_37] : memref<8x4xf32, #tpu.memory_space<smem>>
    %86 = vector.broadcast %85 : f32 to vector<1x128xf32>
    %87 = arith.mulf %1, %86 : vector<1x128xf32>
    %c4_38 = arith.constant 4 : index
    %c1_39 = arith.constant 1 : index
    %88 = memref.load %arg2[%c4_38, %c1_39] : memref<8x4xf32, #tpu.memory_space<smem>>
    %89 = vector.broadcast %88 : f32 to vector<1x128xf32>
    %90 = arith.mulf %2, %89 : vector<1x128xf32>
    %91 = arith.addf %87, %90 : vector<1x128xf32>
    %c4_40 = arith.constant 4 : index
    %c2_41 = arith.constant 2 : index
    %92 = memref.load %arg2[%c4_40, %c2_41] : memref<8x4xf32, #tpu.memory_space<smem>>
    %93 = vector.broadcast %92 : f32 to vector<1x128xf32>
    %94 = arith.mulf %3, %93 : vector<1x128xf32>
    %95 = arith.addf %91, %94 : vector<1x128xf32>
    %c4_42 = arith.constant 4 : index
    %c3_43 = arith.constant 3 : index
    %96 = memref.load %arg2[%c4_42, %c3_43] : memref<8x4xf32, #tpu.memory_space<smem>>
    %97 = vector.broadcast %96 : f32 to vector<1x128xf32>
    %98 = arith.mulf %4, %97 : vector<1x128xf32>
    %99 = arith.addf %95, %98 : vector<1x128xf32>
    %c4_44 = arith.constant 4 : index
    %100 = memref.load %arg3[%c4_44] : memref<8xf32, #tpu.memory_space<smem>>
    %101 = vector.broadcast %100 : f32 to vector<1x128xf32>
    %102 = arith.addf %99, %101 : vector<1x128xf32>
    %cst_45 = arith.constant 0.000000e+00 : f32
    %103 = vector.broadcast %cst_45 : f32 to vector<1x128xf32>
    %104 = arith.maximumf %102, %103 : vector<1x128xf32>
    %c5 = arith.constant 5 : index
    %c0_46 = arith.constant 0 : index
    %105 = memref.load %arg2[%c5, %c0_46] : memref<8x4xf32, #tpu.memory_space<smem>>
    %106 = vector.broadcast %105 : f32 to vector<1x128xf32>
    %107 = arith.mulf %1, %106 : vector<1x128xf32>
    %c5_47 = arith.constant 5 : index
    %c1_48 = arith.constant 1 : index
    %108 = memref.load %arg2[%c5_47, %c1_48] : memref<8x4xf32, #tpu.memory_space<smem>>
    %109 = vector.broadcast %108 : f32 to vector<1x128xf32>
    %110 = arith.mulf %2, %109 : vector<1x128xf32>
    %111 = arith.addf %107, %110 : vector<1x128xf32>
    %c5_49 = arith.constant 5 : index
    %c2_50 = arith.constant 2 : index
    %112 = memref.load %arg2[%c5_49, %c2_50] : memref<8x4xf32, #tpu.memory_space<smem>>
    %113 = vector.broadcast %112 : f32 to vector<1x128xf32>
    %114 = arith.mulf %3, %113 : vector<1x128xf32>
    %115 = arith.addf %111, %114 : vector<1x128xf32>
    %c5_51 = arith.constant 5 : index
    %c3_52 = arith.constant 3 : index
    %116 = memref.load %arg2[%c5_51, %c3_52] : memref<8x4xf32, #tpu.memory_space<smem>>
    %117 = vector.broadcast %116 : f32 to vector<1x128xf32>
    %118 = arith.mulf %4, %117 : vector<1x128xf32>
    %119 = arith.addf %115, %118 : vector<1x128xf32>
    %c5_53 = arith.constant 5 : index
    %120 = memref.load %arg3[%c5_53] : memref<8xf32, #tpu.memory_space<smem>>
    %121 = vector.broadcast %120 : f32 to vector<1x128xf32>
    %122 = arith.addf %119, %121 : vector<1x128xf32>
    %cst_54 = arith.constant 0.000000e+00 : f32
    %123 = vector.broadcast %cst_54 : f32 to vector<1x128xf32>
    %124 = arith.maximumf %122, %123 : vector<1x128xf32>
    %c6 = arith.constant 6 : index
    %c0_55 = arith.constant 0 : index
    %125 = memref.load %arg2[%c6, %c0_55] : memref<8x4xf32, #tpu.memory_space<smem>>
    %126 = vector.broadcast %125 : f32 to vector<1x128xf32>
    %127 = arith.mulf %1, %126 : vector<1x128xf32>
    %c6_56 = arith.constant 6 : index
    %c1_57 = arith.constant 1 : index
    %128 = memref.load %arg2[%c6_56, %c1_57] : memref<8x4xf32, #tpu.memory_space<smem>>
    %129 = vector.broadcast %128 : f32 to vector<1x128xf32>
    %130 = arith.mulf %2, %129 : vector<1x128xf32>
    %131 = arith.addf %127, %130 : vector<1x128xf32>
    %c6_58 = arith.constant 6 : index
    %c2_59 = arith.constant 2 : index
    %132 = memref.load %arg2[%c6_58, %c2_59] : memref<8x4xf32, #tpu.memory_space<smem>>
    %133 = vector.broadcast %132 : f32 to vector<1x128xf32>
    %134 = arith.mulf %3, %133 : vector<1x128xf32>
    %135 = arith.addf %131, %134 : vector<1x128xf32>
    %c6_60 = arith.constant 6 : index
    %c3_61 = arith.constant 3 : index
    %136 = memref.load %arg2[%c6_60, %c3_61] : memref<8x4xf32, #tpu.memory_space<smem>>
    %137 = vector.broadcast %136 : f32 to vector<1x128xf32>
    %138 = arith.mulf %4, %137 : vector<1x128xf32>
    %139 = arith.addf %135, %138 : vector<1x128xf32>
    %c6_62 = arith.constant 6 : index
    %140 = memref.load %arg3[%c6_62] : memref<8xf32, #tpu.memory_space<smem>>
    %141 = vector.broadcast %140 : f32 to vector<1x128xf32>
    %142 = arith.addf %139, %141 : vector<1x128xf32>
    %cst_63 = arith.constant 0.000000e+00 : f32
    %143 = vector.broadcast %cst_63 : f32 to vector<1x128xf32>
    %144 = arith.maximumf %142, %143 : vector<1x128xf32>
    %c7 = arith.constant 7 : index
    %c0_64 = arith.constant 0 : index
    %145 = memref.load %arg2[%c7, %c0_64] : memref<8x4xf32, #tpu.memory_space<smem>>
    %146 = vector.broadcast %145 : f32 to vector<1x128xf32>
    %147 = arith.mulf %1, %146 : vector<1x128xf32>
    %c7_65 = arith.constant 7 : index
    %c1_66 = arith.constant 1 : index
    %148 = memref.load %arg2[%c7_65, %c1_66] : memref<8x4xf32, #tpu.memory_space<smem>>
    %149 = vector.broadcast %148 : f32 to vector<1x128xf32>
    %150 = arith.mulf %2, %149 : vector<1x128xf32>
    %151 = arith.addf %147, %150 : vector<1x128xf32>
    %c7_67 = arith.constant 7 : index
    %c2_68 = arith.constant 2 : index
    %152 = memref.load %arg2[%c7_67, %c2_68] : memref<8x4xf32, #tpu.memory_space<smem>>
    %153 = vector.broadcast %152 : f32 to vector<1x128xf32>
    %154 = arith.mulf %3, %153 : vector<1x128xf32>
    %155 = arith.addf %151, %154 : vector<1x128xf32>
    %c7_69 = arith.constant 7 : index
    %c3_70 = arith.constant 3 : index
    %156 = memref.load %arg2[%c7_69, %c3_70] : memref<8x4xf32, #tpu.memory_space<smem>>
    %157 = vector.broadcast %156 : f32 to vector<1x128xf32>
    %158 = arith.mulf %4, %157 : vector<1x128xf32>
    %159 = arith.addf %155, %158 : vector<1x128xf32>
    %c7_71 = arith.constant 7 : index
    %160 = memref.load %arg3[%c7_71] : memref<8xf32, #tpu.memory_space<smem>>
    %161 = vector.broadcast %160 : f32 to vector<1x128xf32>
    %162 = arith.addf %159, %161 : vector<1x128xf32>
    %cst_72 = arith.constant 0.000000e+00 : f32
    %163 = vector.broadcast %cst_72 : f32 to vector<1x128xf32>
    %164 = arith.maximumf %162, %163 : vector<1x128xf32>
    %c0_73 = arith.constant 0 : index
    %c0_74 = arith.constant 0 : index
    %165 = memref.load %arg4[%c0_73, %c0_74] : memref<4x8xf32, #tpu.memory_space<smem>>
    %166 = vector.broadcast %165 : f32 to vector<1x128xf32>
    %167 = arith.mulf %24, %166 : vector<1x128xf32>
    %c0_75 = arith.constant 0 : index
    %c1_76 = arith.constant 1 : index
    %168 = memref.load %arg4[%c0_75, %c1_76] : memref<4x8xf32, #tpu.memory_space<smem>>
    %169 = vector.broadcast %168 : f32 to vector<1x128xf32>
    %170 = arith.mulf %44, %169 : vector<1x128xf32>
    %171 = arith.addf %167, %170 : vector<1x128xf32>
    %c0_77 = arith.constant 0 : index
    %c2_78 = arith.constant 2 : index
    %172 = memref.load %arg4[%c0_77, %c2_78] : memref<4x8xf32, #tpu.memory_space<smem>>
    %173 = vector.broadcast %172 : f32 to vector<1x128xf32>
    %174 = arith.mulf %64, %173 : vector<1x128xf32>
    %175 = arith.addf %171, %174 : vector<1x128xf32>
    %c0_79 = arith.constant 0 : index
    %c3_80 = arith.constant 3 : index
    %176 = memref.load %arg4[%c0_79, %c3_80] : memref<4x8xf32, #tpu.memory_space<smem>>
    %177 = vector.broadcast %176 : f32 to vector<1x128xf32>
    %178 = arith.mulf %84, %177 : vector<1x128xf32>
    %179 = arith.addf %175, %178 : vector<1x128xf32>
    %c0_81 = arith.constant 0 : index
    %c4_82 = arith.constant 4 : index
    %180 = memref.load %arg4[%c0_81, %c4_82] : memref<4x8xf32, #tpu.memory_space<smem>>
    %181 = vector.broadcast %180 : f32 to vector<1x128xf32>
    %182 = arith.mulf %104, %181 : vector<1x128xf32>
    %183 = arith.addf %179, %182 : vector<1x128xf32>
    %c0_83 = arith.constant 0 : index
    %c5_84 = arith.constant 5 : index
    %184 = memref.load %arg4[%c0_83, %c5_84] : memref<4x8xf32, #tpu.memory_space<smem>>
    %185 = vector.broadcast %184 : f32 to vector<1x128xf32>
    %186 = arith.mulf %124, %185 : vector<1x128xf32>
    %187 = arith.addf %183, %186 : vector<1x128xf32>
    %c0_85 = arith.constant 0 : index
    %c6_86 = arith.constant 6 : index
    %188 = memref.load %arg4[%c0_85, %c6_86] : memref<4x8xf32, #tpu.memory_space<smem>>
    %189 = vector.broadcast %188 : f32 to vector<1x128xf32>
    %190 = arith.mulf %144, %189 : vector<1x128xf32>
    %191 = arith.addf %187, %190 : vector<1x128xf32>
    %c0_87 = arith.constant 0 : index
    %c7_88 = arith.constant 7 : index
    %192 = memref.load %arg4[%c0_87, %c7_88] : memref<4x8xf32, #tpu.memory_space<smem>>
    %193 = vector.broadcast %192 : f32 to vector<1x128xf32>
    %194 = arith.mulf %164, %193 : vector<1x128xf32>
    %195 = arith.addf %191, %194 : vector<1x128xf32>
    %c0_89 = arith.constant 0 : index
    %196 = memref.load %arg5[%c0_89] : memref<4xf32, #tpu.memory_space<smem>>
    %197 = vector.broadcast %196 : f32 to vector<1x128xf32>
    %198 = arith.addf %195, %197 : vector<1x128xf32>
    %cst_90 = arith.constant 0.000000e+00 : f32
    %199 = vector.broadcast %cst_90 : f32 to vector<1x128xf32>
    %200 = arith.maximumf %198, %199 : vector<1x128xf32>
    %c1_91 = arith.constant 1 : index
    %c0_92 = arith.constant 0 : index
    %201 = memref.load %arg4[%c1_91, %c0_92] : memref<4x8xf32, #tpu.memory_space<smem>>
    %202 = vector.broadcast %201 : f32 to vector<1x128xf32>
    %203 = arith.mulf %24, %202 : vector<1x128xf32>
    %c1_93 = arith.constant 1 : index
    %c1_94 = arith.constant 1 : index
    %204 = memref.load %arg4[%c1_93, %c1_94] : memref<4x8xf32, #tpu.memory_space<smem>>
    %205 = vector.broadcast %204 : f32 to vector<1x128xf32>
    %206 = arith.mulf %44, %205 : vector<1x128xf32>
    %207 = arith.addf %203, %206 : vector<1x128xf32>
    %c1_95 = arith.constant 1 : index
    %c2_96 = arith.constant 2 : index
    %208 = memref.load %arg4[%c1_95, %c2_96] : memref<4x8xf32, #tpu.memory_space<smem>>
    %209 = vector.broadcast %208 : f32 to vector<1x128xf32>
    %210 = arith.mulf %64, %209 : vector<1x128xf32>
    %211 = arith.addf %207, %210 : vector<1x128xf32>
    %c1_97 = arith.constant 1 : index
    %c3_98 = arith.constant 3 : index
    %212 = memref.load %arg4[%c1_97, %c3_98] : memref<4x8xf32, #tpu.memory_space<smem>>
    %213 = vector.broadcast %212 : f32 to vector<1x128xf32>
    %214 = arith.mulf %84, %213 : vector<1x128xf32>
    %215 = arith.addf %211, %214 : vector<1x128xf32>
    %c1_99 = arith.constant 1 : index
    %c4_100 = arith.constant 4 : index
    %216 = memref.load %arg4[%c1_99, %c4_100] : memref<4x8xf32, #tpu.memory_space<smem>>
    %217 = vector.broadcast %216 : f32 to vector<1x128xf32>
    %218 = arith.mulf %104, %217 : vector<1x128xf32>
    %219 = arith.addf %215, %218 : vector<1x128xf32>
    %c1_101 = arith.constant 1 : index
    %c5_102 = arith.constant 5 : index
    %220 = memref.load %arg4[%c1_101, %c5_102] : memref<4x8xf32, #tpu.memory_space<smem>>
    %221 = vector.broadcast %220 : f32 to vector<1x128xf32>
    %222 = arith.mulf %124, %221 : vector<1x128xf32>
    %223 = arith.addf %219, %222 : vector<1x128xf32>
    %c1_103 = arith.constant 1 : index
    %c6_104 = arith.constant 6 : index
    %224 = memref.load %arg4[%c1_103, %c6_104] : memref<4x8xf32, #tpu.memory_space<smem>>
    %225 = vector.broadcast %224 : f32 to vector<1x128xf32>
    %226 = arith.mulf %144, %225 : vector<1x128xf32>
    %227 = arith.addf %223, %226 : vector<1x128xf32>
    %c1_105 = arith.constant 1 : index
    %c7_106 = arith.constant 7 : index
    %228 = memref.load %arg4[%c1_105, %c7_106] : memref<4x8xf32, #tpu.memory_space<smem>>
    %229 = vector.broadcast %228 : f32 to vector<1x128xf32>
    %230 = arith.mulf %164, %229 : vector<1x128xf32>
    %231 = arith.addf %227, %230 : vector<1x128xf32>
    %c1_107 = arith.constant 1 : index
    %232 = memref.load %arg5[%c1_107] : memref<4xf32, #tpu.memory_space<smem>>
    %233 = vector.broadcast %232 : f32 to vector<1x128xf32>
    %234 = arith.addf %231, %233 : vector<1x128xf32>
    %cst_108 = arith.constant 0.000000e+00 : f32
    %235 = vector.broadcast %cst_108 : f32 to vector<1x128xf32>
    %236 = arith.maximumf %234, %235 : vector<1x128xf32>
    %c2_109 = arith.constant 2 : index
    %c0_110 = arith.constant 0 : index
    %237 = memref.load %arg4[%c2_109, %c0_110] : memref<4x8xf32, #tpu.memory_space<smem>>
    %238 = vector.broadcast %237 : f32 to vector<1x128xf32>
    %239 = arith.mulf %24, %238 : vector<1x128xf32>
    %c2_111 = arith.constant 2 : index
    %c1_112 = arith.constant 1 : index
    %240 = memref.load %arg4[%c2_111, %c1_112] : memref<4x8xf32, #tpu.memory_space<smem>>
    %241 = vector.broadcast %240 : f32 to vector<1x128xf32>
    %242 = arith.mulf %44, %241 : vector<1x128xf32>
    %243 = arith.addf %239, %242 : vector<1x128xf32>
    %c2_113 = arith.constant 2 : index
    %c2_114 = arith.constant 2 : index
    %244 = memref.load %arg4[%c2_113, %c2_114] : memref<4x8xf32, #tpu.memory_space<smem>>
    %245 = vector.broadcast %244 : f32 to vector<1x128xf32>
    %246 = arith.mulf %64, %245 : vector<1x128xf32>
    %247 = arith.addf %243, %246 : vector<1x128xf32>
    %c2_115 = arith.constant 2 : index
    %c3_116 = arith.constant 3 : index
    %248 = memref.load %arg4[%c2_115, %c3_116] : memref<4x8xf32, #tpu.memory_space<smem>>
    %249 = vector.broadcast %248 : f32 to vector<1x128xf32>
    %250 = arith.mulf %84, %249 : vector<1x128xf32>
    %251 = arith.addf %247, %250 : vector<1x128xf32>
    %c2_117 = arith.constant 2 : index
    %c4_118 = arith.constant 4 : index
    %252 = memref.load %arg4[%c2_117, %c4_118] : memref<4x8xf32, #tpu.memory_space<smem>>
    %253 = vector.broadcast %252 : f32 to vector<1x128xf32>
    %254 = arith.mulf %104, %253 : vector<1x128xf32>
    %255 = arith.addf %251, %254 : vector<1x128xf32>
    %c2_119 = arith.constant 2 : index
    %c5_120 = arith.constant 5 : index
    %256 = memref.load %arg4[%c2_119, %c5_120] : memref<4x8xf32, #tpu.memory_space<smem>>
    %257 = vector.broadcast %256 : f32 to vector<1x128xf32>
    %258 = arith.mulf %124, %257 : vector<1x128xf32>
    %259 = arith.addf %255, %258 : vector<1x128xf32>
    %c2_121 = arith.constant 2 : index
    %c6_122 = arith.constant 6 : index
    %260 = memref.load %arg4[%c2_121, %c6_122] : memref<4x8xf32, #tpu.memory_space<smem>>
    %261 = vector.broadcast %260 : f32 to vector<1x128xf32>
    %262 = arith.mulf %144, %261 : vector<1x128xf32>
    %263 = arith.addf %259, %262 : vector<1x128xf32>
    %c2_123 = arith.constant 2 : index
    %c7_124 = arith.constant 7 : index
    %264 = memref.load %arg4[%c2_123, %c7_124] : memref<4x8xf32, #tpu.memory_space<smem>>
    %265 = vector.broadcast %264 : f32 to vector<1x128xf32>
    %266 = arith.mulf %164, %265 : vector<1x128xf32>
    %267 = arith.addf %263, %266 : vector<1x128xf32>
    %c2_125 = arith.constant 2 : index
    %268 = memref.load %arg5[%c2_125] : memref<4xf32, #tpu.memory_space<smem>>
    %269 = vector.broadcast %268 : f32 to vector<1x128xf32>
    %270 = arith.addf %267, %269 : vector<1x128xf32>
    %cst_126 = arith.constant 0.000000e+00 : f32
    %271 = vector.broadcast %cst_126 : f32 to vector<1x128xf32>
    %272 = arith.maximumf %270, %271 : vector<1x128xf32>
    %c3_127 = arith.constant 3 : index
    %c0_128 = arith.constant 0 : index
    %273 = memref.load %arg4[%c3_127, %c0_128] : memref<4x8xf32, #tpu.memory_space<smem>>
    %274 = vector.broadcast %273 : f32 to vector<1x128xf32>
    %275 = arith.mulf %24, %274 : vector<1x128xf32>
    %c3_129 = arith.constant 3 : index
    %c1_130 = arith.constant 1 : index
    %276 = memref.load %arg4[%c3_129, %c1_130] : memref<4x8xf32, #tpu.memory_space<smem>>
    %277 = vector.broadcast %276 : f32 to vector<1x128xf32>
    %278 = arith.mulf %44, %277 : vector<1x128xf32>
    %279 = arith.addf %275, %278 : vector<1x128xf32>
    %c3_131 = arith.constant 3 : index
    %c2_132 = arith.constant 2 : index
    %280 = memref.load %arg4[%c3_131, %c2_132] : memref<4x8xf32, #tpu.memory_space<smem>>
    %281 = vector.broadcast %280 : f32 to vector<1x128xf32>
    %282 = arith.mulf %64, %281 : vector<1x128xf32>
    %283 = arith.addf %279, %282 : vector<1x128xf32>
    %c3_133 = arith.constant 3 : index
    %c3_134 = arith.constant 3 : index
    %284 = memref.load %arg4[%c3_133, %c3_134] : memref<4x8xf32, #tpu.memory_space<smem>>
    %285 = vector.broadcast %284 : f32 to vector<1x128xf32>
    %286 = arith.mulf %84, %285 : vector<1x128xf32>
    %287 = arith.addf %283, %286 : vector<1x128xf32>
    %c3_135 = arith.constant 3 : index
    %c4_136 = arith.constant 4 : index
    %288 = memref.load %arg4[%c3_135, %c4_136] : memref<4x8xf32, #tpu.memory_space<smem>>
    %289 = vector.broadcast %288 : f32 to vector<1x128xf32>
    %290 = arith.mulf %104, %289 : vector<1x128xf32>
    %291 = arith.addf %287, %290 : vector<1x128xf32>
    %c3_137 = arith.constant 3 : index
    %c5_138 = arith.constant 5 : index
    %292 = memref.load %arg4[%c3_137, %c5_138] : memref<4x8xf32, #tpu.memory_space<smem>>
    %293 = vector.broadcast %292 : f32 to vector<1x128xf32>
    %294 = arith.mulf %124, %293 : vector<1x128xf32>
    %295 = arith.addf %291, %294 : vector<1x128xf32>
    %c3_139 = arith.constant 3 : index
    %c6_140 = arith.constant 6 : index
    %296 = memref.load %arg4[%c3_139, %c6_140] : memref<4x8xf32, #tpu.memory_space<smem>>
    %297 = vector.broadcast %296 : f32 to vector<1x128xf32>
    %298 = arith.mulf %144, %297 : vector<1x128xf32>
    %299 = arith.addf %295, %298 : vector<1x128xf32>
    %c3_141 = arith.constant 3 : index
    %c7_142 = arith.constant 7 : index
    %300 = memref.load %arg4[%c3_141, %c7_142] : memref<4x8xf32, #tpu.memory_space<smem>>
    %301 = vector.broadcast %300 : f32 to vector<1x128xf32>
    %302 = arith.mulf %164, %301 : vector<1x128xf32>
    %303 = arith.addf %299, %302 : vector<1x128xf32>
    %c3_143 = arith.constant 3 : index
    %304 = memref.load %arg5[%c3_143] : memref<4xf32, #tpu.memory_space<smem>>
    %305 = vector.broadcast %304 : f32 to vector<1x128xf32>
    %306 = arith.addf %303, %305 : vector<1x128xf32>
    %cst_144 = arith.constant 0.000000e+00 : f32
    %307 = vector.broadcast %cst_144 : f32 to vector<1x128xf32>
    %308 = arith.maximumf %306, %307 : vector<1x128xf32>
    %c0_145 = arith.constant 0 : index
    %c0_146 = arith.constant 0 : index
    %309 = memref.load %arg6[%c0_145, %c0_146] : memref<2x4xf32, #tpu.memory_space<smem>>
    %310 = vector.broadcast %309 : f32 to vector<1x128xf32>
    %311 = arith.mulf %200, %310 : vector<1x128xf32>
    %c0_147 = arith.constant 0 : index
    %c1_148 = arith.constant 1 : index
    %312 = memref.load %arg6[%c0_147, %c1_148] : memref<2x4xf32, #tpu.memory_space<smem>>
    %313 = vector.broadcast %312 : f32 to vector<1x128xf32>
    %314 = arith.mulf %236, %313 : vector<1x128xf32>
    %315 = arith.addf %311, %314 : vector<1x128xf32>
    %c0_149 = arith.constant 0 : index
    %c2_150 = arith.constant 2 : index
    %316 = memref.load %arg6[%c0_149, %c2_150] : memref<2x4xf32, #tpu.memory_space<smem>>
    %317 = vector.broadcast %316 : f32 to vector<1x128xf32>
    %318 = arith.mulf %272, %317 : vector<1x128xf32>
    %319 = arith.addf %315, %318 : vector<1x128xf32>
    %c0_151 = arith.constant 0 : index
    %c3_152 = arith.constant 3 : index
    %320 = memref.load %arg6[%c0_151, %c3_152] : memref<2x4xf32, #tpu.memory_space<smem>>
    %321 = vector.broadcast %320 : f32 to vector<1x128xf32>
    %322 = arith.mulf %308, %321 : vector<1x128xf32>
    %323 = arith.addf %319, %322 : vector<1x128xf32>
    %c0_153 = arith.constant 0 : index
    %324 = memref.load %arg7[%c0_153] : memref<2xf32, #tpu.memory_space<smem>>
    %325 = vector.broadcast %324 : f32 to vector<1x128xf32>
    %326 = arith.addf %323, %325 : vector<1x128xf32>
    %c1_154 = arith.constant 1 : index
    %c0_155 = arith.constant 0 : index
    %327 = memref.load %arg6[%c1_154, %c0_155] : memref<2x4xf32, #tpu.memory_space<smem>>
    %328 = vector.broadcast %327 : f32 to vector<1x128xf32>
    %329 = arith.mulf %200, %328 : vector<1x128xf32>
    %c1_156 = arith.constant 1 : index
    %c1_157 = arith.constant 1 : index
    %330 = memref.load %arg6[%c1_156, %c1_157] : memref<2x4xf32, #tpu.memory_space<smem>>
    %331 = vector.broadcast %330 : f32 to vector<1x128xf32>
    %332 = arith.mulf %236, %331 : vector<1x128xf32>
    %333 = arith.addf %329, %332 : vector<1x128xf32>
    %c1_158 = arith.constant 1 : index
    %c2_159 = arith.constant 2 : index
    %334 = memref.load %arg6[%c1_158, %c2_159] : memref<2x4xf32, #tpu.memory_space<smem>>
    %335 = vector.broadcast %334 : f32 to vector<1x128xf32>
    %336 = arith.mulf %272, %335 : vector<1x128xf32>
    %337 = arith.addf %333, %336 : vector<1x128xf32>
    %c1_160 = arith.constant 1 : index
    %c3_161 = arith.constant 3 : index
    %338 = memref.load %arg6[%c1_160, %c3_161] : memref<2x4xf32, #tpu.memory_space<smem>>
    %339 = vector.broadcast %338 : f32 to vector<1x128xf32>
    %340 = arith.mulf %308, %339 : vector<1x128xf32>
    %341 = arith.addf %337, %340 : vector<1x128xf32>
    %c1_162 = arith.constant 1 : index
    %342 = memref.load %arg7[%c1_162] : memref<2xf32, #tpu.memory_space<smem>>
    %343 = vector.broadcast %342 : f32 to vector<1x128xf32>
    %344 = arith.addf %341, %343 : vector<1x128xf32>
    %345 = arith.maximumf %326, %344 : vector<1x128xf32>
    %346 = arith.subf %326, %345 : vector<1x128xf32>
    %347 = math.exp %346 : vector<1x128xf32>
    %348 = arith.subf %344, %345 : vector<1x128xf32>
    %349 = math.exp %348 : vector<1x128xf32>
    %350 = arith.addf %347, %349 : vector<1x128xf32>
    %351 = tpu.reciprocal %350 {approx = true} : vector<1x128xf32> -> vector<1x128xf32>
    %352 = arith.mulf %347, %351 : vector<1x128xf32>
    %353 = arith.mulf %349, %351 : vector<1x128xf32>
    %354 = tpu.concatenate %352, %353 in 0 : vector<1x128xf32>, vector<1x128xf32> -> vector<2x128xf32>
    %c0_163 = arith.constant 0 : index
    %c0_164 = arith.constant 0 : index
    %355 = vector.load %arg8[%c0_163, %c0_164] : memref<2x128xf32, #tpu.memory_space<vmem>>, vector<2x128xf32>
    tpu.vector_store %arg8[%c0_163, %c0_164], %354 {strides = array<i32>} : memref<2x128xf32, #tpu.memory_space<vmem>>, vector<2x128xf32>,
    return
  }
  func.func @transform_0(%arg0: i32) -> (i32, i32) {
    %c0_i32 = arith.constant 0 : i32
    %c0_i32_0 = arith.constant 0 : i32
    return %c0_i32, %arg0 : i32, i32
  }
  func.func @transform_1(%arg0: i32) -> (i32, i32) {
    %c0_i32 = arith.constant 0 : i32
    %c0_i32_0 = arith.constant 0 : i32
    %c0_i32_1 = arith.constant 0 : i32
    return %c0_i32, %c0_i32_0 : i32, i32
  }
  func.func @transform_2(%arg0: i32) -> i32 {
    %c0_i32 = arith.constant 0 : i32
    %c0_i32_0 = arith.constant 0 : i32
    return %c0_i32 : i32
  }
  func.func @transform_3(%arg0: i32) -> (i32, i32) {
    %c0_i32 = arith.constant 0 : i32
    %c0_i32_0 = arith.constant 0 : i32
    %c0_i32_1 = arith.constant 0 : i32
    return %c0_i32, %c0_i32_0 : i32, i32
  }
  func.func @transform_4(%arg0: i32) -> i32 {
    %c0_i32 = arith.constant 0 : i32
    %c0_i32_0 = arith.constant 0 : i32
    return %c0_i32 : i32
  }
  func.func @transform_5(%arg0: i32) -> (i32, i32) {
    %c0_i32 = arith.constant 0 : i32
    %c0_i32_0 = arith.constant 0 : i32
    %c0_i32_1 = arith.constant 0 : i32
    return %c0_i32, %c0_i32_0 : i32, i32
  }
  func.func @transform_6(%arg0: i32) -> i32 {
    %c0_i32 = arith.constant 0 : i32
    %c0_i32_0 = arith.constant 0 : i32
    return %c0_i32 : i32
  }
  func.func @transform_7(%arg0: i32) -> (i32, i32) {
    %c0_i32 = arith.constant 0 : i32
    %c0_i32_0 = arith.constant 0 : i32
    return %c0_i32, %arg0 : i32, i32
  }
}

</mosaic_0001>

<llo_original>
// kernel: tpu_custom_call.1
$region0: #{tpu_custom_call.1}
  #allocation0 [shape = 'u32[]', space=smem, size = 0x4, offset = 0x4, fixed_abs, tag = 'smem constant byte address 0x4 - core index']
  #allocation1 [shape = 'u32[72,128]{1,0:T(1,128)}', space=vmem, size = 0x9000, scoped, tag = 'internal scratch']
  %s0 = inlined_call_operand.vmem [shape: f32[4,128], index: 0, kind: input, shape index: {}]
  %s1 = inlined_call_operand.vmem [shape: f32[8,4], index: 1, kind: input, shape index: {}]
  %s2 = inlined_call_operand.vmem [shape: f32[8], index: 2, kind: input, shape index: {}]
  %s3 = inlined_call_operand.vmem [shape: f32[4,8], index: 3, kind: input, shape index: {}]
  %s4 = inlined_call_operand.vmem [shape: f32[4], index: 4, kind: input, shape index: {}]
  %s5 = inlined_call_operand.vmem [shape: f32[2,4], index: 5, kind: input, shape index: {}]
  %s6 = inlined_call_operand.vmem [shape: f32[2], index: 6, kind: input, shape index: {}]
  %s7 = inlined_call_operand.hbm [shape: f32[2,128], index: 7, kind: output, shape index: {}]
  %s8 = sld [smem:[#allocation0]]
  $region62: #{tpu_custom_call.1} parent=0
    _
  %s10 = ssub.s32 1, %s8
  %s11 = scalar_select 0, %s10, %s8
  $region1: #{tpu_custom_call.1} parent=0
    #allocation2 [shape = 'u8[4096]{0}', space=smem, size = 0x1000, scoped, tag = 'input window, operand 1, single buffered']
    #allocation3 [shape = 's32[1]{0}', space=sflag, size = 0x4, scoped, tag = 'scoped memory for tpu_custom_call.1']
    #allocation4 [shape = 's32[1]{0}', space=sflag, size = 0x4, scoped, tag = 'scoped memory for tpu_custom_call.1']
    #allocation5 [shape = 'u8[512]{0}', space=smem, size = 0x200, scoped, tag = 'input window, operand 2, single buffered']
    #allocation6 [shape = 's32[1]{0}', space=sflag, size = 0x4, scoped, tag = 'scoped memory for tpu_custom_call.1']
    #allocation7 [shape = 'u8[2048]{0}', space=smem, size = 0x800, scoped, tag = 'input window, operand 3, single buffered']
    #allocation8 [shape = 'u8[512]{0}', space=smem, size = 0x200, scoped, tag = 'input window, operand 4, single buffered']
    #allocation9 [shape = 's32[1]{0}', space=sflag, size = 0x4, scoped, tag = 'scoped memory for tpu_custom_call.1']
    #allocation10 [shape = 'u8[1024]{0}', space=smem, size = 0x400, scoped, tag = 'input window, operand 5, single buffered']
    #allocation11 [shape = 'u8[512]{0}', space=smem, size = 0x200, scoped, tag = 'input window, operand 6, single buffered']
    #allocation12 [shape = 's32[1]{0}', space=sflag, size = 0x4, scoped, tag = 'scoped memory for tpu_custom_call.1']
    #allocation13 [shape = 'u8[1024]{0}', space=vmem, size = 0x400, scoped, tag = 'output window, operand 0, single buffered']
    %12 = vsyncpa [#allocation4], 0
    %13 = vsyncpa [#allocation6], 0
    %14 = vsyncpa [#allocation9], 0
    %15 = vsyncpa [#allocation12], 0
    %16 = vsyncpa [#allocation3], 0
    // Predicated region
    $region2: #{tpu_custom_call.1} parent=1 // pred_check
      _
    $region3: #{tpu_custom_call.1} parent=1 // pred_check_branch
      %18 = sbr.rel (0) target = $region5
    $region4: #{tpu_custom_call.1} parent=1 // pred_region
      _
    $region5: #{tpu_custom_call.1} parent=1 // pred_fallthru
      _
    // Predicated region
    $region6: #{tpu_custom_call.1} parent=1 // pred_check
      _
    $region7: #{tpu_custom_call.1} parent=1 // pred_check_branch
      %20 = sbr.rel (0) target = $region9
    $region8: #{tpu_custom_call.1} parent=1 // pred_region
      %22 = vsyncadd [#allocation4], 0
      %s24 = sshll.u32 %s1, 4
      %s25 = int_to_ptr.vmem [resolvable:$true] %s24
      %27 = dma.vmem_to_smem %s25, 128, [#allocation2], [#allocation4]
    $region9: #{tpu_custom_call.1} parent=1 // pred_fallthru
      _
    // Predicated region
    $region10: #{tpu_custom_call.1} parent=1 // pred_check
      _
    $region11: #{tpu_custom_call.1} parent=1 // pred_check_branch
      %29 = sbr.rel (0) target = $region13
    $region12: #{tpu_custom_call.1} parent=1 // pred_region
      %31 = vsyncadd [#allocation6], 0
      %s33 = sshll.u32 %s2, 4
      %s34 = int_to_ptr.vmem [resolvable:$true] %s33
      %36 = dma.vmem_to_smem %s34, 16, [#allocation5], [#allocation6]
    $region13: #{tpu_custom_call.1} parent=1 // pred_fallthru
      _
    // Predicated region
    $region14: #{tpu_custom_call.1} parent=1 // pred_check
      _
    $region15: #{tpu_custom_call.1} parent=1 // pred_check_branch
      %38 = sbr.rel (0) target = $region17
    $region16: #{tpu_custom_call.1} parent=1 // pred_region
      %40 = vsyncadd [#allocation6], 0
      %s42 = sshll.u32 %s3, 4
      %s43 = int_to_ptr.vmem [resolvable:$true] %s42
      %45 = dma.vmem_to_smem %s43, 64, [#allocation7], [#allocation6]
    $region17: #{tpu_custom_call.1} parent=1 // pred_fallthru
      _
    // Predicated region
    $region18: #{tpu_custom_call.1} parent=1 // pred_check
      _
    $region19: #{tpu_custom_call.1} parent=1 // pred_check_branch
      %47 = sbr.rel (0) target = $region21
    $region20: #{tpu_custom_call.1} parent=1 // pred_region
      %49 = vsyncadd [#allocation9], 0
      %s51 = sshll.u32 %s4, 4
      %s52 = int_to_ptr.vmem [resolvable:$true] %s51
      %54 = dma.vmem_to_smem %s52, 16, [#allocation8], [#allocation9]
    $region21: #{tpu_custom_call.1} parent=1 // pred_fallthru
      _
    // Predicated region
    $region22: #{tpu_custom_call.1} parent=1 // pred_check
      _
    $region23: #{tpu_custom_call.1} parent=1 // pred_check_branch
      %56 = sbr.rel (0) target = $region25
    $region24: #{tpu_custom_call.1} parent=1 // pred_region
      %58 = vsyncadd [#allocation9], 0
      %s60 = sshll.u32 %s5, 4
      %s61 = int_to_ptr.vmem [resolvable:$true] %s60
      %63 = dma.vmem_to_smem %s61, 32, [#allocation10], [#allocation9]
    $region25: #{tpu_custom_call.1} parent=1 // pred_fallthru
      _
    // Predicated region
    $region26: #{tpu_custom_call.1} parent=1 // pred_check
      _
    $region27: #{tpu_custom_call.1} parent=1 // pred_check_branch
      %65 = sbr.rel (0) target = $region29
    $region28: #{tpu_custom_call.1} parent=1 // pred_region
      %67 = vsyncadd [#allocation12], 0
      %s69 = sshll.u32 %s6, 4
      %s70 = int_to_ptr.vmem [resolvable:$true] %s69
      %72 = dma.vmem_to_smem %s70, 16, [#allocation11], [#allocation12]
    $region29: #{tpu_custom_call.1} parent=1 // pred_fallthru
      _
    // Predicated region
    $region30: #{tpu_custom_call.1} parent=1 // pred_check
      _
    $region31: #{tpu_custom_call.1} parent=1 // pred_check_branch
      %74 = sbr.rel (0) target = $region33
    $region32: #{tpu_custom_call.1} parent=1 // pred_region
      %76 = dma.done [#allocation4], 128
    $region33: #{tpu_custom_call.1} parent=1 // pred_fallthru
      _
    // Predicated region
    $region34: #{tpu_custom_call.1} parent=1 // pred_check
      _
    $region35: #{tpu_custom_call.1} parent=1 // pred_check_branch
      %78 = sbr.rel (0) target = $region37
    $region36: #{tpu_custom_call.1} parent=1 // pred_region
      %80 = dma.done [#allocation6], 16
    $region37: #{tpu_custom_call.1} parent=1 // pred_fallthru
      _
    // Predicated region
    $region38: #{tpu_custom_call.1} parent=1 // pred_check
      _
    $region39: #{tpu_custom_call.1} parent=1 // pred_check_branch
      %82 = sbr.rel (0) target = $region41
    $region40: #{tpu_custom_call.1} parent=1 // pred_region
      %84 = dma.done [#allocation6], 64
    $region41: #{tpu_custom_call.1} parent=1 // pred_fallthru
      _
    // Predicated region
    $region42: #{tpu_custom_call.1} parent=1 // pred_check
      _
    $region43: #{tpu_custom_call.1} parent=1 // pred_check_branch
      %86 = sbr.rel (0) target = $region45
    $region44: #{tpu_custom_call.1} parent=1 // pred_region
      %88 = dma.done [#allocation9], 16
    $region45: #{tpu_custom_call.1} parent=1 // pred_fallthru
      _
    // Predicated region
    $region46: #{tpu_custom_call.1} parent=1 // pred_check
      _
    $region47: #{tpu_custom_call.1} parent=1 // pred_check_branch
      %90 = sbr.rel (0) target = $region49
    $region48: #{tpu_custom_call.1} parent=1 // pred_region
      %92 = dma.done [#allocation9], 32
    $region49: #{tpu_custom_call.1} parent=1 // pred_fallthru
      _
    // Predicated region
    $region50: #{tpu_custom_call.1} parent=1 // pred_check
      _
    $region51: #{tpu_custom_call.1} parent=1 // pred_check_branch
      %94 = sbr.rel (0) target = $region53
    $region52: #{tpu_custom_call.1} parent=1 // pred_region
      %96 = dma.done [#allocation12], 16
    $region53: #{tpu_custom_call.1} parent=1 // pred_fallthru
      _
    %97 = sfence
    %v98 = vld [vmem:[%s0] sm:$0xf]
    %s99 = sld [smem:[#allocation2]]
    %v100 = vstv %s99
    %v101 = vmul.f32 %v98, %v100
    %s102 = sld [smem:[#allocation2 + $0x1]]
    %v103 = vstv %s102
    %v104 = vmul.f32 %v98, %v103
    %v106 = vrot.slane %v104, 1
    %v108 = vadd.f32 %v101, %v106
    %s109 = sld [smem:[#allocation2 + $0x2]]
    %v110 = vstv %s109
    %v111 = vmul.f32 %v98, %v110
    %v113 = vrot.slane %v111, 2
    %v115 = vadd.f32 %v108, %v113
    %s116 = sld [smem:[#allocation2 + $0x3]]
    %v117 = vstv %s116
    %v118 = vmul.f32 %v98, %v117
    %v120 = vrot.slane %v118, 3
    %v122 = vadd.f32 %v115, %v120
    %s123 = sld [smem:[#allocation5]]
    %v124 = vstv %s123
    %v125 = vadd.f32 %v122, %v124
    %v126 = vmax.f32 %v125, 0.0
    %s127 = sld [smem:[#allocation2 + $0x80]]
    %v128 = vstv %s127
    %v129 = vmul.f32 %v98, %v128
    %s130 = sld [smem:[#allocation2 + $0x81]]
    %v131 = vstv %s130
    %v132 = vmul.f32 %v98, %v131
    %v134 = vrot.slane %v132, 1
    %v136 = vadd.f32 %v129, %v134
    %s137 = sld [smem:[#allocation2 + $0x82]]
    %v138 = vstv %s137
    %v139 = vmul.f32 %v98, %v138
    %v141 = vrot.slane %v139, 2
    %v143 = vadd.f32 %v136, %v141
    %s144 = sld [smem:[#allocation2 + $0x83]]
    %v145 = vstv %s144
    %v146 = vmul.f32 %v98, %v145
    %v148 = vrot.slane %v146, 3
    %v150 = vadd.f32 %v143, %v148
    %s151 = sld [smem:[#allocation5 + $0x1]]
    %v152 = vstv %s151
    %v153 = vadd.f32 %v150, %v152
    %v154 = vmax.f32 %v153, 0.0
    %s155 = sld [smem:[#allocation2 + $0x100]]
    %v156 = vstv %s155
    %v157 = vmul.f32 %v98, %v156
    %s158 = sld [smem:[#allocation2 + $0x101]]
    %v159 = vstv %s158
    %v160 = vmul.f32 %v98, %v159
    %v162 = vrot.slane %v160, 1
    %v164 = vadd.f32 %v157, %v162
    %s165 = sld [smem:[#allocation2 + $0x102]]
    %v166 = vstv %s165
    %v167 = vmul.f32 %v98, %v166
    %v169 = vrot.slane %v167, 2
    %v171 = vadd.f32 %v164, %v169
    %s172 = sld [smem:[#allocation2 + $0x103]]
    %v173 = vstv %s172
    %v174 = vmul.f32 %v98, %v173
    %v176 = vrot.slane %v174, 3
    %v178 = vadd.f32 %v171, %v176
    %s179 = sld [smem:[#allocation5 + $0x2]]
    %v180 = vstv %s179
    %v181 = vadd.f32 %v178, %v180
    %v182 = vmax.f32 %v181, 0.0
    %s183 = sld [smem:[#allocation2 + $0x180]]
    %v184 = vstv %s183
    %v185 = vmul.f32 %v98, %v184
    %s186 = sld [smem:[#allocation2 + $0x181]]
    %v187 = vstv %s186
    %v188 = vmul.f32 %v98, %v187
    %v190 = vrot.slane %v188, 1
    %v192 = vadd.f32 %v185, %v190
    %s193 = sld [smem:[#allocation2 + $0x182]]
    %v194 = vstv %s193
    %v195 = vmul.f32 %v98, %v194
    %v197 = vrot.slane %v195, 2
    %v199 = vadd.f32 %v192, %v197
    %s200 = sld [smem:[#allocation2 + $0x183]]
    %v201 = vstv %s200
    %v202 = vmul.f32 %v98, %v201
    %v204 = vrot.slane %v202, 3
    %v206 = vadd.f32 %v199, %v204
    %s207 = sld [smem:[#allocation5 + $0x3]]
    %v208 = vstv %s207
    %v209 = vadd.f32 %v206, %v208
    %v210 = vmax.f32 %v209, 0.0
    %s211 = sld [smem:[#allocation2 + $0x200]]
    %v212 = vstv %s211
    %v213 = vmul.f32 %v98, %v212
    %s214 = sld [smem:[#allocation2 + $0x201]]
    %v215 = vstv %s214
    %v216 = vmul.f32 %v98, %v215
    %v218 = vrot.slane %v216, 1
    %v220 = vadd.f32 %v213, %v218
    %s221 = sld [smem:[#allocation2 + $0x202]]
    %v222 = vstv %s221
    %v223 = vmul.f32 %v98, %v222
    %v225 = vrot.slane %v223, 2
    %v227 = vadd.f32 %v220, %v225
    %s228 = sld [smem:[#allocation2 + $0x203]]
    %v229 = vstv %s228
    %v230 = vmul.f32 %v98, %v229
    %v232 = vrot.slane %v230, 3
    %v234 = vadd.f32 %v227, %v232
    %s235 = sld [smem:[#allocation5 + $0x4]]
    %v236 = vstv %s235
    %v237 = vadd.f32 %v234, %v236
    %v238 = vmax.f32 %v237, 0.0
    %s239 = sld [smem:[#allocation2 + $0x280]]
    %v240 = vstv %s239
    %v241 = vmul.f32 %v98, %v240
    %s242 = sld [smem:[#allocation2 + $0x281]]
    %v243 = vstv %s242
    %v244 = vmul.f32 %v98, %v243
    %v246 = vrot.slane %v244, 1
    %v248 = vadd.f32 %v241, %v246
    %s249 = sld [smem:[#allocation2 + $0x282]]
    %v250 = vstv %s249
    %v251 = vmul.f32 %v98, %v250
    %v253 = vrot.slane %v251, 2
    %v255 = vadd.f32 %v248, %v253
    %s256 = sld [smem:[#allocation2 + $0x283]]
    %v257 = vstv %s256
    %v258 = vmul.f32 %v98, %v257
    %v260 = vrot.slane %v258, 3
    %v262 = vadd.f32 %v255, %v260
    %s263 = sld [smem:[#allocation5 + $0x5]]
    %v264 = vstv %s263
    %v265 = vadd.f32 %v262, %v264
    %v266 = vmax.f32 %v265, 0.0
    %s267 = sld [smem:[#allocation2 + $0x300]]
    %v268 = vstv %s267
    %v269 = vmul.f32 %v98, %v268
    %s270 = sld [smem:[#allocation2 + $0x301]]
    %v271 = vstv %s270
    %v272 = vmul.f32 %v98, %v271
    %v274 = vrot.slane %v272, 1
    %v276 = vadd.f32 %v269, %v274
    %s277 = sld [smem:[#allocation2 + $0x302]]
    %v278 = vstv %s277
    %v279 = vmul.f32 %v98, %v278
    %v281 = vrot.slane %v279, 2
    %v283 = vadd.f32 %v276, %v281
    %s284 = sld [smem:[#allocation2 + $0x303]]
    %v285 = vstv %s284
    %v286 = vmul.f32 %v98, %v285
    %v288 = vrot.slane %v286, 3
    %v290 = vadd.f32 %v283, %v288
    %s291 = sld [smem:[#allocation5 + $0x6]]
    %v292 = vstv %s291
    %v293 = vadd.f32 %v290, %v292
    %v294 = vmax.f32 %v293, 0.0
    %s295 = sld [smem:[#allocation2 + $0x380]]
    %v296 = vstv %s295
    %v297 = vmul.f32 %v98, %v296
    %s298 = sld [smem:[#allocation2 + $0x381]]
    %v299 = vstv %s298
    %v300 = vmul.f32 %v98, %v299
    %v302 = vrot.slane %v300, 1
    %v304 = vadd.f32 %v297, %v302
    %s305 = sld [smem:[#allocation2 + $0x382]]
    %v306 = vstv %s305
    %v307 = vmul.f32 %v98, %v306
    %v309 = vrot.slane %v307, 2
    %v311 = vadd.f32 %v304, %v309
    %s312 = sld [smem:[#allocation2 + $0x383]]
    %v313 = vstv %s312
    %v314 = vmul.f32 %v98, %v313
    %v316 = vrot.slane %v314, 3
    %v318 = vadd.f32 %v311, %v316
    %s319 = sld [smem:[#allocation5 + $0x7]]
    %v320 = vstv %s319
    %v321 = vadd.f32 %v318, %v320
    %v322 = vmax.f32 %v321, 0.0
    %s323 = sld [smem:[#allocation7]]
    %v324 = vstv %s323
    %v325 = vmul.f32 %v126, %v324
    %s326 = sld [smem:[#allocation7 + $0x1]]
    %v327 = vstv %s326
    %v328 = vmul.f32 %v154, %v327
    %v329 = vadd.f32 %v325, %v328
    %s330 = sld [smem:[#allocation7 + $0x2]]
    %v331 = vstv %s330
    %v332 = vmul.f32 %v182, %v331
    %v333 = vadd.f32 %v329, %v332
    %s334 = sld [smem:[#allocation7 + $0x3]]
    %v335 = vstv %s334
    %v336 = vmul.f32 %v210, %v335
    %v337 = vadd.f32 %v333, %v336
    %s338 = sld [smem:[#allocation7 + $0x4]]
    %v339 = vstv %s338
    %v340 = vmul.f32 %v238, %v339
    %v341 = vadd.f32 %v337, %v340
    %s342 = sld [smem:[#allocation7 + $0x5]]
    %v343 = vstv %s342
    %v344 = vmul.f32 %v266, %v343
    %v345 = vadd.f32 %v341, %v344
    %s346 = sld [smem:[#allocation7 + $0x6]]
    %v347 = vstv %s346
    %v348 = vmul.f32 %v294, %v347
    %v349 = vadd.f32 %v345, %v348
    %s350 = sld [smem:[#allocation7 + $0x7]]
    %v351 = vstv %s350
    %v352 = vmul.f32 %v322, %v351
    %v353 = vadd.f32 %v349, %v352
    %s354 = sld [smem:[#allocation8]]
    %v355 = vstv %s354
    %v356 = vadd.f32 %v353, %v355
    %v357 = vmax.f32 %v356, 0.0
    %s358 = sld [smem:[#allocation7 + $0x80]]
    %v359 = vstv %s358
    %v360 = vmul.f32 %v126, %v359
    %s361 = sld [smem:[#allocation7 + $0x81]]
    %v362 = vstv %s361
    %v363 = vmul.f32 %v154, %v362
    %v364 = vadd.f32 %v360, %v363
    %s365 = sld [smem:[#allocation7 + $0x82]]
    %v366 = vstv %s365
    %v367 = vmul.f32 %v182, %v366
    %v368 = vadd.f32 %v364, %v367
    %s369 = sld [smem:[#allocation7 + $0x83]]
    %v370 = vstv %s369
    %v371 = vmul.f32 %v210, %v370
    %v372 = vadd.f32 %v368, %v371
    %s373 = sld [smem:[#allocation7 + $0x84]]
    %v374 = vstv %s373
    %v375 = vmul.f32 %v238, %v374
    %v376 = vadd.f32 %v372, %v375
    %s377 = sld [smem:[#allocation7 + $0x85]]
    %v378 = vstv %s377
    %v379 = vmul.f32 %v266, %v378
    %v380 = vadd.f32 %v376, %v379
    %s381 = sld [smem:[#allocation7 + $0x86]]
    %v382 = vstv %s381
    %v383 = vmul.f32 %v294, %v382
    %v384 = vadd.f32 %v380, %v383
    %s385 = sld [smem:[#allocation7 + $0x87]]
    %v386 = vstv %s385
    %v387 = vmul.f32 %v322, %v386
    %v388 = vadd.f32 %v384, %v387
    %s389 = sld [smem:[#allocation8 + $0x1]]
    %v390 = vstv %s389
    %v391 = vadd.f32 %v388, %v390
    %v392 = vmax.f32 %v391, 0.0
    %s393 = sld [smem:[#allocation7 + $0x100]]
    %v394 = vstv %s393
    %v395 = vmul.f32 %v126, %v394
    %s396 = sld [smem:[#allocation7 + $0x101]]
    %v397 = vstv %s396
    %v398 = vmul.f32 %v154, %v397
    %v399 = vadd.f32 %v395, %v398
    %s400 = sld [smem:[#allocation7 + $0x102]]
    %v401 = vstv %s400
    %v402 = vmul.f32 %v182, %v401
    %v403 = vadd.f32 %v399, %v402
    %s404 = sld [smem:[#allocation7 + $0x103]]
    %v405 = vstv %s404
    %v406 = vmul.f32 %v210, %v405
    %v407 = vadd.f32 %v403, %v406
    %s408 = sld [smem:[#allocation7 + $0x104]]
    %v409 = vstv %s408
    %v410 = vmul.f32 %v238, %v409
    %v411 = vadd.f32 %v407, %v410
    %s412 = sld [smem:[#allocation7 + $0x105]]
    %v413 = vstv %s412
    %v414 = vmul.f32 %v266, %v413
    %v415 = vadd.f32 %v411, %v414
    %s416 = sld [smem:[#allocation7 + $0x106]]
    %v417 = vstv %s416
    %v418 = vmul.f32 %v294, %v417
    %v419 = vadd.f32 %v415, %v418
    %s420 = sld [smem:[#allocation7 + $0x107]]
    %v421 = vstv %s420
    %v422 = vmul.f32 %v322, %v421
    %v423 = vadd.f32 %v419, %v422
    %s424 = sld [smem:[#allocation8 + $0x2]]
    %v425 = vstv %s424
    %v426 = vadd.f32 %v423, %v425
    %v427 = vmax.f32 %v426, 0.0
    %s428 = sld [smem:[#allocation7 + $0x180]]
    %v429 = vstv %s428
    %v430 = vmul.f32 %v126, %v429
    %s431 = sld [smem:[#allocation7 + $0x181]]
    %v432 = vstv %s431
    %v433 = vmul.f32 %v154, %v432
    %v434 = vadd.f32 %v430, %v433
    %s435 = sld [smem:[#allocation7 + $0x182]]
    %v436 = vstv %s435
    %v437 = vmul.f32 %v182, %v436
    %v438 = vadd.f32 %v434, %v437
    %s439 = sld [smem:[#allocation7 + $0x183]]
    %v440 = vstv %s439
    %v441 = vmul.f32 %v210, %v440
    %v442 = vadd.f32 %v438, %v441
    %s443 = sld [smem:[#allocation7 + $0x184]]
    %v444 = vstv %s443
    %v445 = vmul.f32 %v238, %v444
    %v446 = vadd.f32 %v442, %v445
    %s447 = sld [smem:[#allocation7 + $0x185]]
    %v448 = vstv %s447
    %v449 = vmul.f32 %v266, %v448
    %v450 = vadd.f32 %v446, %v449
    %s451 = sld [smem:[#allocation7 + $0x186]]
    %v452 = vstv %s451
    %v453 = vmul.f32 %v294, %v452
    %v454 = vadd.f32 %v450, %v453
    %s455 = sld [smem:[#allocation7 + $0x187]]
    %v456 = vstv %s455
    %v457 = vmul.f32 %v322, %v456
    %v458 = vadd.f32 %v454, %v457
    %s459 = sld [smem:[#allocation8 + $0x3]]
    %v460 = vstv %s459
    %v461 = vadd.f32 %v458, %v460
    %v462 = vmax.f32 %v461, 0.0
    %s463 = sld [smem:[#allocation10]]
    %v464 = vstv %s463
    %v465 = vmul.f32 %v357, %v464
    %s466 = sld [smem:[#allocation10 + $0x1]]
    %v467 = vstv %s466
    %v468 = vmul.f32 %v392, %v467
    %v469 = vadd.f32 %v465, %v468
    %s470 = sld [smem:[#allocation10 + $0x2]]
    %v471 = vstv %s470
    %v472 = vmul.f32 %v427, %v471
    %v473 = vadd.f32 %v469, %v472
    %s474 = sld [smem:[#allocation10 + $0x3]]
    %v475 = vstv %s474
    %v476 = vmul.f32 %v462, %v475
    %v477 = vadd.f32 %v473, %v476
    %s478 = sld [smem:[#allocation11]]
    %v479 = vstv %s478
    %v480 = vadd.f32 %v477, %v479
    %s481 = sld [smem:[#allocation10 + $0x80]]
    %v482 = vstv %s481
    %v483 = vmul.f32 %v357, %v482
    %s484 = sld [smem:[#allocation10 + $0x81]]
    %v485 = vstv %s484
    %v486 = vmul.f32 %v392, %v485
    %v487 = vadd.f32 %v483, %v486
    %s488 = sld [smem:[#allocation10 + $0x82]]
    %v489 = vstv %s488
    %v490 = vmul.f32 %v427, %v489
    %v491 = vadd.f32 %v487, %v490
    %s492 = sld [smem:[#allocation10 + $0x83]]
    %v493 = vstv %s492
    %v494 = vmul.f32 %v462, %v493
    %v495 = vadd.f32 %v491, %v494
    %s496 = sld [smem:[#allocation11 + $0x1]]
    %v497 = vstv %s496
    %v498 = vadd.f32 %v495, %v497
    %v499 = vmax.f32 %v480, %v498
    %v500 = vsub.f32 %v480, %v499
    %v501 = vmul.f32 %v500, 1.442695
    %v502 = vpow.pop %v501
    %v503 = vsub.f32 %v498, %v499
    %v504 = vmul.f32 %v503, 1.442695
    %v505 = vpow.pop %v504
    %v506 = vadd.f32 %v502, %v505
    %v507 = vrcp.pop %v506
    %v508 = vmul.f32 %v502, %v507
    %v509 = vmul.f32 %v505, %v507
    %v511 = vrot.slane %v509, 7
    %vm513 = vcmask 1040384
    %v514 = vsel %vm513, %v508, %v511
    %515 = vst [vmem:[#allocation13] sm:$0x3] %v514
    // Predicated region
    $region54: #{tpu_custom_call.1} parent=1 // pred_check
      _
    $region55: #{tpu_custom_call.1} parent=1 // pred_check_branch
      %517 = sbr.rel (0) target = $region57
    $region56: #{tpu_custom_call.1} parent=1 // pred_region
      %519 = vsyncadd [#allocation3], 0
      %s521 = sshll.u32 [#allocation13], 4
      %s522 = int_to_ptr.vmem [resolvable:$true] %s521
      %s523 = sshll.u32 %s7, 4
      %s524 = int_to_ptr.hbm [resolvable:$true] %s523
      %526 = dma.vmem_to_hbm [thread:$0]  %s522, 32, %s524, [#allocation3]
    $region57: #{tpu_custom_call.1} parent=1 // pred_fallthru
      _
    // Predicated region
    $region58: #{tpu_custom_call.1} parent=1 // pred_check
      _
    $region59: #{tpu_custom_call.1} parent=1 // pred_check_branch
      %528 = sbr.rel (0) target = $region61
    $region60: #{tpu_custom_call.1} parent=1 // pred_region
      %530 = dma.done [#allocation3], 32
    $region61: #{tpu_custom_call.1} parent=1 // pred_fallthru
      _
    %531 = vsyncpa [#allocation3], 1
    %532 = vsyncpa [#allocation4], 1
    %533 = vsyncpa [#allocation6], 1
    %534 = vsyncpa [#allocation9], 1
    %535 = vsyncpa [#allocation12], 1

</llo_original>
